<compile_context>
chip_gen: v5e
topology: v5e:2x2
jax: 0.10.0
libtpu: 0.0.40
codegen_flags: <defaults>
</compile_context>

<pallas_src>
import numpy as np
import jax
import jax.numpy as jnp
from jax.experimental import pallas as pl
from jax.experimental.pallas import tpu as pltpu  # noqa: F401  (TPU backend)

B = 2        # batch size
E = 3        # num_edge_types
S = 16       # seq len
DIN = 128    # input_dim
DOUT = 128   # embedding_dim


# ------------------------------ fused kernel ------------------------------

def gcn_kernel(x_ref, adj_ref, gw_ref, gb_ref, cw_ref, cb_ref, out_ref):
    # Shapes (all static):
    #   x_ref   : (B*S, DIN)      bf16
    #   adj_ref : (B, E, S, S)    bf16 (0/1)
    #   gw_ref  : (DIN, E)        bf16,  gb_ref: (1, E)        f32
    #   cw_ref  : (DIN, E*DOUT)   bf16,  cb_ref: (1, E*DOUT)   f32
    #   out_ref : (B*S, DOUT)     f32
    b_sz, e_sz, s_sz, _ = adj_ref.shape
    d_out = out_ref.shape[1]

    x = x_ref[...]                                           # (B*S, DIN) bf16
    adj = adj_ref[...]                                       # (B, E, S, S) bf16

    # All E gate projections in one MXU matmul; sigmoid (EUP) in f32.
    logits = jnp.dot(x, gw_ref[...],
                     preferred_element_type=jnp.float32) + gb_ref[...]
    gates_bf = jax.nn.sigmoid(logits).astype(jnp.bfloat16)   # (B*S, E)

    # All E graph-conv projections in one MXU matmul.
    h = jnp.dot(x, cw_ref[...],
                preferred_element_type=jnp.float32) + cb_ref[...]
    h_bf = h.astype(jnp.bfloat16)                            # (B*S, E*DOUT)

    for b in range(b_sz):                                    # static unroll (B tiny)
        g_b = gates_bf[b * s_sz:(b + 1) * s_sz, :]           # (S, E)
        acc = jnp.zeros((s_sz, d_out), jnp.float32)
        for i in range(e_sz):                                # static unroll (E tiny)
            # Pre-gate the adjacency rows (diag(g_i) A_i), then one small
            # (S,S)@(S,DOUT) MXU matmul with f32 accumulation.
            adj_hat = adj[b, i] * g_b[:, i:i + 1]            # (S, S) bf16
            acc = acc + jnp.dot(
                adj_hat,
                h_bf[b * s_sz:(b + 1) * s_sz, i * d_out:(i + 1) * d_out],
                preferred_element_type=jnp.float32)
        # ReLU; dropout is identity here.
        # TODO(synk): F.dropout(p=0.5) in the original forward is stochastic even
        # at inference (functional call defaults training=True); treated as identity.
        out_ref[b * s_sz:(b + 1) * s_sz, :] = jnp.maximum(acc, 0.0)


def gcn_pallas(x, adj, gw, gb, cw, cb):
    """x: (B,S,DIN) f32, adj: (B,E,S,S) f32/bf16, stacked bf16 weights, f32 biases."""
    x_flat = jnp.reshape(x, (B * S, DIN)).astype(jnp.bfloat16)
    adj_bf = adj.astype(jnp.bfloat16)          # 0/1 -> exact in bf16
    out_flat = pl.pallas_call(
        gcn_kernel,
        out_shape=jax.ShapeDtypeStruct((B * S, DOUT), jnp.float32),
        # No grid / no BlockSpecs: the whole problem (~0.2 MiB) fits in VMEM on
        # every generation, so every operand is mapped whole into VMEM and the
        # kernel runs as a single step.
    )(x_flat, adj_bf, gw, gb, cw, cb)
    return out_flat.reshape(B, S, DOUT)


# ------------------------------ pure-JAX reference ------------------------------

def reference(x, adj, gw, gb, cw, cb):
    hp = jax.lax.Precision.HIGHEST
    logits = jnp.einsum('bsd,de->bse', x, gw, precision=hp) + gb
    gates = jax.nn.sigmoid(logits)                                  # (B, S, E)
    h = (jnp.einsum('bsd,df->bsf', x, cw, precision=hp) + cb
         ).reshape(B, S, E, DOUT)
    ts = jnp.zeros((B, S, DOUT), jnp.float32)
    for i in range(E):
        adj_hat = adj[:, i] * gates[:, :, i][:, :, None]            # row scaling
        ts = ts + jnp.einsum('bst,btd->bsd', adj_hat, h[:, :, i], precision=hp)
    return jnp.maximum(ts, 0.0)


# ------------------------------ main ------------------------------

if __name__ == "__main__":
    key = jax.random.PRNGKey(0)
    kx, ka, kgw, kgb, kcw, kcb = jax.random.split(key, 6)

    x = jax.random.normal(kx, (B, S, DIN), jnp.float32)
    adj = (jax.random.uniform(ka, (B, E, S, S)) < 0.3).astype(jnp.float32)

    # Per-edge nn.Linear weights stacked/fused host-side:
    #   gate weights -> (DIN, E), conv weights -> (DIN, E*DOUT).
    gw = jax.random.normal(kgw, (DIN, E), jnp.float32) * 0.08
    gb = jax.random.normal(kgb, (1, E), jnp.float32) * 0.08
    cw = jax.random.normal(kcw, (DIN, E * DOUT), jnp.float32) * 0.08
    cb = jax.random.normal(kcb, (1, E * DOUT), jnp.float32) * 0.08

    out = gcn_pallas(x, adj,
                     gw.astype(jnp.bfloat16), gb,
                     cw.astype(jnp.bfloat16), cb)
    out = jax.block_until_ready(out)

    ref = reference(x, adj, gw, gb, cw, cb)
    np.testing.assert_allclose(np.asarray(out), np.asarray(ref),
                               rtol=2e-2, atol=2e-2)
    print("KERNEL_OK")
</pallas_src>

<mosaic_0001>
module attributes {stable_mosaic.version = 11 : i64} {
  func.func @gcn_kernel(%arg0: memref<32x128xbf16, #tpu.memory_space<vmem>>, %arg1: memref<2x3x16x16xbf16, #tpu.memory_space<vmem>>, %arg2: memref<128x3xbf16, #tpu.memory_space<vmem>>, %arg3: memref<1x3xf32, #tpu.memory_space<vmem>>, %arg4: memref<128x384xbf16, #tpu.memory_space<vmem>>, %arg5: memref<1x384xf32, #tpu.memory_space<vmem>>, %arg6: memref<32x128xf32, #tpu.memory_space<vmem>>) attributes {dimension_semantics = [], scalar_prefetch = 0 : i64, scratch_operands = 0 : i64, tpu.core_type = #tpu.core_type<tc>} {
    %c0 = arith.constant 0 : index
    %c0_0 = arith.constant 0 : index
    %0 = vector.load %arg0[%c0, %c0_0] : memref<32x128xbf16, #tpu.memory_space<vmem>>, vector<32x128xbf16>
    %c0_1 = arith.constant 0 : index
    %c0_2 = arith.constant 0 : index
    %c0_3 = arith.constant 0 : index
    %c0_4 = arith.constant 0 : index
    %1 = vector.load %arg1[%c0_1, %c0_2, %c0_3, %c0_4] : memref<2x3x16x16xbf16, #tpu.memory_space<vmem>>, vector<2x3x16x16xbf16>
    %c0_5 = arith.constant 0 : index
    %c0_6 = arith.constant 0 : index
    %2 = vector.load %arg2[%c0_5, %c0_6] : memref<128x3xbf16, #tpu.memory_space<vmem>>, vector<128x3xbf16>
    %cst = arith.constant dense<0.000000e+00> : vector<32x3xf32>
    %3 = tpu.matmul %0, %2, %cst {dimension_numbers = #tpu.dot_dimension_numbers<[1], [0], [0], [1], [0, 0, 1, 1], [], []>} : vector<32x128xbf16>, vector<128x3xbf16>, vector<32x3xf32> -> vector<32x3xf32>
    %c0_7 = arith.constant 0 : index
    %c0_8 = arith.constant 0 : index
    %4 = vector.load %arg3[%c0_7, %c0_8] : memref<1x3xf32, #tpu.memory_space<vmem>>, vector<1x3xf32>
    %5 = vector.broadcast %4 : vector<1x3xf32> to vector<32x3xf32>
    %6 = arith.addf %3, %5 : vector<32x3xf32>
    %7 = arith.negf %6 : vector<32x3xf32>
    %8 = math.exp %7 : vector<32x3xf32>
    %cst_9 = arith.constant 1.000000e+00 : f32
    %9 = vector.broadcast %cst_9 : f32 to vector<32x3xf32>
    %10 = arith.addf %9, %8 : vector<32x3xf32>
    %11 = arith.divf %9, %10 : vector<32x3xf32>
    %12 = arith.truncf %11 : vector<32x3xf32> to vector<32x3xbf16>
    %c0_10 = arith.constant 0 : index
    %c0_11 = arith.constant 0 : index
    %13 = vector.load %arg4[%c0_10, %c0_11] : memref<128x384xbf16, #tpu.memory_space<vmem>>, vector<128x384xbf16>
    %cst_12 = arith.constant dense<0.000000e+00> : vector<32x384xf32>
    %14 = tpu.matmul %0, %13, %cst_12 {dimension_numbers = #tpu.dot_dimension_numbers<[1], [0], [0], [1], [0, 0, 1, 1], [], []>} : vector<32x128xbf16>, vector<128x384xbf16>, vector<32x384xf32> -> vector<32x384xf32>
    %c0_13 = arith.constant 0 : index
    %c0_14 = arith.constant 0 : index
    %15 = vector.load %arg5[%c0_13, %c0_14] : memref<1x384xf32, #tpu.memory_space<vmem>>, vector<1x384xf32>
    %16 = vector.broadcast %15 : vector<1x384xf32> to vector<32x384xf32>
    %17 = arith.addf %14, %16 : vector<32x384xf32>
    %18 = arith.truncf %17 : vector<32x384xf32> to vector<32x384xbf16>
    %19 = vector.extract_strided_slice %12 {offsets = [0, 0], sizes = [16, 3], strides = [1, 1]} : vector<32x3xbf16> to vector<16x3xbf16>
    %cst_15 = arith.constant 0.000000e+00 : f32
    %20 = vector.broadcast %cst_15 : f32 to vector<16x128xf32>
    %21 = vector.extract_strided_slice %1 {offsets = [0, 0, 0, 0], sizes = [1, 1, 16, 16], strides = [1, 1, 1, 1]} : vector<2x3x16x16xbf16> to vector<1x1x16x16xbf16>
    %22 = vector.shape_cast %21 : vector<1x1x16x16xbf16> to vector<16x16xbf16>
    %23 = vector.extract_strided_slice %19 {offsets = [0, 0], sizes = [16, 1], strides = [1, 1]} : vector<16x3xbf16> to vector<16x1xbf16>
    %24 = vector.broadcast %23 : vector<16x1xbf16> to vector<16x16xbf16>
    %25 = arith.mulf %22, %24 : vector<16x16xbf16>
    %26 = vector.extract_strided_slice %18 {offsets = [0, 0], sizes = [16, 128], strides = [1, 1]} : vector<32x384xbf16> to vector<16x128xbf16>
    %cst_16 = arith.constant dense<0.000000e+00> : vector<16x128xf32>
    %27 = tpu.matmul %25, %26, %cst_16 {dimension_numbers = #tpu.dot_dimension_numbers<[1], [0], [0], [1], [0, 0, 1, 1], [], []>} : vector<16x16xbf16>, vector<16x128xbf16>, vector<16x128xf32> -> vector<16x128xf32>
    %28 = arith.addf %20, %27 : vector<16x128xf32>
    %29 = vector.extract_strided_slice %1 {offsets = [0, 1, 0, 0], sizes = [1, 1, 16, 16], strides = [1, 1, 1, 1]} : vector<2x3x16x16xbf16> to vector<1x1x16x16xbf16>
    %30 = vector.shape_cast %29 : vector<1x1x16x16xbf16> to vector<16x16xbf16>
    %31 = vector.extract_strided_slice %19 {offsets = [0, 1], sizes = [16, 1], strides = [1, 1]} : vector<16x3xbf16> to vector<16x1xbf16>
    %32 = vector.broadcast %31 : vector<16x1xbf16> to vector<16x16xbf16>
    %33 = arith.mulf %30, %32 : vector<16x16xbf16>
    %34 = vector.extract_strided_slice %18 {offsets = [0, 128], sizes = [16, 128], strides = [1, 1]} : vector<32x384xbf16> to vector<16x128xbf16>
    %cst_17 = arith.constant dense<0.000000e+00> : vector<16x128xf32>
    %35 = tpu.matmul %33, %34, %cst_17 {dimension_numbers = #tpu.dot_dimension_numbers<[1], [0], [0], [1], [0, 0, 1, 1], [], []>} : vector<16x16xbf16>, vector<16x128xbf16>, vector<16x128xf32> -> vector<16x128xf32>
    %36 = arith.addf %28, %35 : vector<16x128xf32>
    %37 = vector.extract_strided_slice %1 {offsets = [0, 2, 0, 0], sizes = [1, 1, 16, 16], strides = [1, 1, 1, 1]} : vector<2x3x16x16xbf16> to vector<1x1x16x16xbf16>
    %38 = vector.shape_cast %37 : vector<1x1x16x16xbf16> to vector<16x16xbf16>
    %39 = vector.extract_strided_slice %19 {offsets = [0, 2], sizes = [16, 1], strides = [1, 1]} : vector<16x3xbf16> to vector<16x1xbf16>
    %40 = vector.broadcast %39 : vector<16x1xbf16> to vector<16x16xbf16>
    %41 = arith.mulf %38, %40 : vector<16x16xbf16>
    %42 = vector.extract_strided_slice %18 {offsets = [0, 256], sizes = [16, 128], strides = [1, 1]} : vector<32x384xbf16> to vector<16x128xbf16>
    %cst_18 = arith.constant dense<0.000000e+00> : vector<16x128xf32>
    %43 = tpu.matmul %41, %42, %cst_18 {dimension_numbers = #tpu.dot_dimension_numbers<[1], [0], [0], [1], [0, 0, 1, 1], [], []>} : vector<16x16xbf16>, vector<16x128xbf16>, vector<16x128xf32> -> vector<16x128xf32>
    %44 = arith.addf %36, %43 : vector<16x128xf32>
    %cst_19 = arith.constant 0.000000e+00 : f32
    %45 = vector.broadcast %cst_19 : f32 to vector<16x128xf32>
    %46 = arith.maximumf %44, %45 : vector<16x128xf32>
    %c0_20 = arith.constant 0 : index
    %c0_21 = arith.constant 0 : index
    %47 = vector.load %arg6[%c0_20, %c0_21] : memref<32x128xf32, #tpu.memory_space<vmem>>, vector<16x128xf32>
    tpu.vector_store %arg6[%c0_20, %c0_21], %46 {strides = array<i32>} : memref<32x128xf32, #tpu.memory_space<vmem>>, vector<16x128xf32>,
    %48 = vector.extract_strided_slice %12 {offsets = [16, 0], sizes = [16, 3], strides = [1, 1]} : vector<32x3xbf16> to vector<16x3xbf16>
    %cst_22 = arith.constant 0.000000e+00 : f32
    %49 = vector.broadcast %cst_22 : f32 to vector<16x128xf32>
    %50 = vector.extract_strided_slice %1 {offsets = [1, 0, 0, 0], sizes = [1, 1, 16, 16], strides = [1, 1, 1, 1]} : vector<2x3x16x16xbf16> to vector<1x1x16x16xbf16>
    %51 = vector.shape_cast %50 : vector<1x1x16x16xbf16> to vector<16x16xbf16>
    %52 = vector.extract_strided_slice %48 {offsets = [0, 0], sizes = [16, 1], strides = [1, 1]} : vector<16x3xbf16> to vector<16x1xbf16>
    %53 = vector.broadcast %52 : vector<16x1xbf16> to vector<16x16xbf16>
    %54 = arith.mulf %51, %53 : vector<16x16xbf16>
    %55 = vector.extract_strided_slice %18 {offsets = [16, 0], sizes = [16, 128], strides = [1, 1]} : vector<32x384xbf16> to vector<16x128xbf16>
    %cst_23 = arith.constant dense<0.000000e+00> : vector<16x128xf32>
    %56 = tpu.matmul %54, %55, %cst_23 {dimension_numbers = #tpu.dot_dimension_numbers<[1], [0], [0], [1], [0, 0, 1, 1], [], []>} : vector<16x16xbf16>, vector<16x128xbf16>, vector<16x128xf32> -> vector<16x128xf32>
    %57 = arith.addf %49, %56 : vector<16x128xf32>
    %58 = vector.extract_strided_slice %1 {offsets = [1, 1, 0, 0], sizes = [1, 1, 16, 16], strides = [1, 1, 1, 1]} : vector<2x3x16x16xbf16> to vector<1x1x16x16xbf16>
    %59 = vector.shape_cast %58 : vector<1x1x16x16xbf16> to vector<16x16xbf16>
    %60 = vector.extract_strided_slice %48 {offsets = [0, 1], sizes = [16, 1], strides = [1, 1]} : vector<16x3xbf16> to vector<16x1xbf16>
    %61 = vector.broadcast %60 : vector<16x1xbf16> to vector<16x16xbf16>
    %62 = arith.mulf %59, %61 : vector<16x16xbf16>
    %63 = vector.extract_strided_slice %18 {offsets = [16, 128], sizes = [16, 128], strides = [1, 1]} : vector<32x384xbf16> to vector<16x128xbf16>
    %cst_24 = arith.constant dense<0.000000e+00> : vector<16x128xf32>
    %64 = tpu.matmul %62, %63, %cst_24 {dimension_numbers = #tpu.dot_dimension_numbers<[1], [0], [0], [1], [0, 0, 1, 1], [], []>} : vector<16x16xbf16>, vector<16x128xbf16>, vector<16x128xf32> -> vector<16x128xf32>
    %65 = arith.addf %57, %64 : vector<16x128xf32>
    %66 = vector.extract_strided_slice %1 {offsets = [1, 2, 0, 0], sizes = [1, 1, 16, 16], strides = [1, 1, 1, 1]} : vector<2x3x16x16xbf16> to vector<1x1x16x16xbf16>
    %67 = vector.shape_cast %66 : vector<1x1x16x16xbf16> to vector<16x16xbf16>
    %68 = vector.extract_strided_slice %48 {offsets = [0, 2], sizes = [16, 1], strides = [1, 1]} : vector<16x3xbf16> to vector<16x1xbf16>
    %69 = vector.broadcast %68 : vector<16x1xbf16> to vector<16x16xbf16>
    %70 = arith.mulf %67, %69 : vector<16x16xbf16>
    %71 = vector.extract_strided_slice %18 {offsets = [16, 256], sizes = [16, 128], strides = [1, 1]} : vector<32x384xbf16> to vector<16x128xbf16>
    %cst_25 = arith.constant dense<0.000000e+00> : vector<16x128xf32>
    %72 = tpu.matmul %70, %71, %cst_25 {dimension_numbers = #tpu.dot_dimension_numbers<[1], [0], [0], [1], [0, 0, 1, 1], [], []>} : vector<16x16xbf16>, vector<16x128xbf16>, vector<16x128xf32> -> vector<16x128xf32>
    %73 = arith.addf %65, %72 : vector<16x128xf32>
    %cst_26 = arith.constant 0.000000e+00 : f32
    %74 = vector.broadcast %cst_26 : f32 to vector<16x128xf32>
    %75 = arith.maximumf %73, %74 : vector<16x128xf32>
    %c16 = arith.constant 16 : index
    %c0_27 = arith.constant 0 : index
    %76 = vector.load %arg6[%c16, %c0_27] : memref<32x128xf32, #tpu.memory_space<vmem>>, vector<16x128xf32>
    tpu.vector_store %arg6[%c16, %c0_27], %75 {strides = array<i32>} : memref<32x128xf32, #tpu.memory_space<vmem>>, vector<16x128xf32>,
    return
  }
}

</mosaic_0001>

<llo_original>
// kernel: tpu_custom_call.1
$region0: #{tpu_custom_call.1}
  #allocation0 [shape = 'u32[]', space=smem, size = 0x4, offset = 0x4, fixed_abs, tag = 'smem constant byte address 0x4 - core index']
  #allocation1 [shape = 'u32[72,128]{1,0:T(1,128)}', space=vmem, size = 0x9000, scoped, tag = 'internal scratch']
  %s0 = inlined_call_operand.vmem [shape: bf16[32,128], index: 0, kind: input, shape index: {}]
  %s1 = inlined_call_operand.vmem [shape: bf16[2,3,16,16], index: 1, kind: input, shape index: {}]
  %s2 = inlined_call_operand.vmem [shape: bf16[128,3], index: 2, kind: input, shape index: {}]
  %s3 = inlined_call_operand.vmem [shape: f32[1,3], index: 3, kind: input, shape index: {}]
  %s4 = inlined_call_operand.hbm [shape: bf16[128,384], index: 4, kind: input, shape index: {}]
  %s5 = inlined_call_operand.vmem [shape: f32[1,384], index: 5, kind: input, shape index: {}]
  %s6 = inlined_call_operand.hbm [shape: f32[32,128], index: 6, kind: output, shape index: {}]
  %s7 = sld [smem:[#allocation0]]
  $region38: #{tpu_custom_call.1} parent=0
    _
  %s9 = ssub.s32 1, %s7
  %s10 = scalar_select 0, %s9, %s7
  $region1: #{tpu_custom_call.1} parent=0
    #allocation2 [shape = 'u8[98304]{0}', space=vmem, size = 0x18000, scoped, tag = 'input window, operand 4, single buffered']
    #allocation3 [shape = 's32[1]{0}', space=sflag, size = 0x4, scoped, tag = 'scoped memory for tpu_custom_call.1']
    #allocation4 [shape = 's32[1]{0}', space=sflag, size = 0x4, scoped, tag = 'scoped memory for tpu_custom_call.1']
    #allocation5 [shape = 'u8[16384]{0}', space=vmem, size = 0x4000, scoped, tag = 'output window, operand 0, single buffered']
    %11 = vsyncpa [#allocation3], 0
    %12 = vsyncpa [#allocation4], 0
    // Predicated region
    $region2: #{tpu_custom_call.1} parent=1 // pred_check
      _
    $region3: #{tpu_custom_call.1} parent=1 // pred_check_branch
      %14 = sbr.rel (0) target = $region5
    $region4: #{tpu_custom_call.1} parent=1 // pred_region
      _
    $region5: #{tpu_custom_call.1} parent=1 // pred_fallthru
      _
    // Predicated region
    $region6: #{tpu_custom_call.1} parent=1 // pred_check
      _
    $region7: #{tpu_custom_call.1} parent=1 // pred_check_branch
      %16 = sbr.rel (0) target = $region9
    $region8: #{tpu_custom_call.1} parent=1 // pred_region
      _
    $region9: #{tpu_custom_call.1} parent=1 // pred_fallthru
      _
    // Predicated region
    $region10: #{tpu_custom_call.1} parent=1 // pred_check
      _
    $region11: #{tpu_custom_call.1} parent=1 // pred_check_branch
      %18 = sbr.rel (0) target = $region13
    $region12: #{tpu_custom_call.1} parent=1 // pred_region
      _
    $region13: #{tpu_custom_call.1} parent=1 // pred_fallthru
      _
    // Predicated region
    $region14: #{tpu_custom_call.1} parent=1 // pred_check
      _
    $region15: #{tpu_custom_call.1} parent=1 // pred_check_branch
      %20 = sbr.rel (0) target = $region17
    $region16: #{tpu_custom_call.1} parent=1 // pred_region
      _
    $region17: #{tpu_custom_call.1} parent=1 // pred_fallthru
      _
    // Predicated region
    $region18: #{tpu_custom_call.1} parent=1 // pred_check
      _
    $region19: #{tpu_custom_call.1} parent=1 // pred_check_branch
      %22 = sbr.rel (0) target = $region21
    $region20: #{tpu_custom_call.1} parent=1 // pred_region
      %24 = vsyncadd [#allocation3], 0
      %s25 = sshll.u32 %s4, 4
      %s26 = int_to_ptr.hbm [resolvable:$true] %s25
      %s27 = sshll.u32 [#allocation2], 4
      %s28 = int_to_ptr.vmem [resolvable:$true] %s27
      %33 = dma.hbm_to_vmem [thread:$0]  %s26, 3072, %s28, [#allocation3], 192, 192, 12
    $region21: #{tpu_custom_call.1} parent=1 // pred_fallthru
      _
    // Predicated region
    $region22: #{tpu_custom_call.1} parent=1 // pred_check
      _
    $region23: #{tpu_custom_call.1} parent=1 // pred_check_branch
      %35 = sbr.rel (0) target = $region25
    $region24: #{tpu_custom_call.1} parent=1 // pred_region
      _
    $region25: #{tpu_custom_call.1} parent=1 // pred_fallthru
      _
    // Predicated region
    $region26: #{tpu_custom_call.1} parent=1 // pred_check
      _
    $region27: #{tpu_custom_call.1} parent=1 // pred_check_branch
      %37 = sbr.rel (0) target = $region29
    $region28: #{tpu_custom_call.1} parent=1 // pred_region
      %39 = dma.done [#allocation3], 3072
    $region29: #{tpu_custom_call.1} parent=1 // pred_fallthru
      _
    %v41 = vld [vmem:[%s0] sm:$0xf]
    %v42 = vld [vmem:[%s0 + $0x4] sm:$0xf]
    %v43 = vld [vmem:[%s0 + $0x8] sm:$0xf]
    %v44 = vld [vmem:[%s0 + $0xc] sm:$0xf]
    %v45 = vld [vmem:[%s1] sm:$0xf]
    %v46 = vld [vmem:[%s1 + $0x4] sm:$0xf]
    %v47 = vld [vmem:[%s1 + $0x8] sm:$0xf]
    %v48 = vld [vmem:[%s1 + $0xc] sm:$0xf]
    %v49 = vld [vmem:[%s1 + $0x10] sm:$0xf]
    %v50 = vld [vmem:[%s1 + $0x14] sm:$0xf]
    %v51 = vld [vmem:[%s1 + $0x18] sm:$0xf]
    %v52 = vld [vmem:[%s1 + $0x1c] sm:$0xf]
    %v53 = vld [vmem:[%s1 + $0x20] sm:$0xf]
    %v54 = vld [vmem:[%s1 + $0x24] sm:$0xf]
    %v55 = vld [vmem:[%s1 + $0x28] sm:$0xf]
    %v56 = vld [vmem:[%s1 + $0x2c] sm:$0xf]
    %v57 = vld [vmem:[%s2] sm:$0xf]
    %v58 = vld [vmem:[%s2 + $0x4] sm:$0xf]
    %v59 = vld [vmem:[%s2 + $0x8] sm:$0xf]
    %v60 = vld [vmem:[%s2 + $0xc] sm:$0xf]
    %v61 = vld [vmem:[%s2 + $0x10] sm:$0xf]
    %v62 = vld [vmem:[%s2 + $0x14] sm:$0xf]
    %v63 = vld [vmem:[%s2 + $0x18] sm:$0xf]
    %v64 = vld [vmem:[%s2 + $0x1c] sm:$0xf]
    %v65 = vld [vmem:[%s2 + $0x20] sm:$0xf]
    %v66 = vld [vmem:[%s2 + $0x24] sm:$0xf]
    %v67 = vld [vmem:[%s2 + $0x28] sm:$0xf]
    %v68 = vld [vmem:[%s2 + $0x2c] sm:$0xf]
    %v69 = vld [vmem:[%s2 + $0x30] sm:$0xf]
    %v70 = vld [vmem:[%s2 + $0x34] sm:$0xf]
    %v71 = vld [vmem:[%s2 + $0x38] sm:$0xf]
    %v72 = vld [vmem:[%s2 + $0x3c] sm:$0xf]
    %v73 = vld [vmem:[%s3] sm:$0x1]
    %v75 = vperm.slane %v73, 0
    %v81 = vunpack.c.l.b16 %v41
    %v82 = vunpack.c.l.b16 %v42
    %v83 = vunpack.c.l.b16 %v43
    %v84 = vunpack.c.l.b16 %v44
    %v85 = vpack.c.b16 %v82, %v81
    %v86 = vpack.c.b16 %v84, %v83
    %v105 = vunpack.c.l.b16 %v57
    %v106 = vunpack.c.l.b16 %v58
    %v107 = vunpack.c.l.b16 %v59
    %v108 = vunpack.c.l.b16 %v60
    %v109 = vunpack.c.l.b16 %v61
    %v110 = vunpack.c.l.b16 %v62
    %v111 = vunpack.c.l.b16 %v63
    %v112 = vunpack.c.l.b16 %v64
    %v113 = vunpack.c.l.b16 %v65
    %v114 = vunpack.c.l.b16 %v66
    %v115 = vunpack.c.l.b16 %v67
    %v116 = vunpack.c.l.b16 %v68
    %v117 = vunpack.c.l.b16 %v69
    %v118 = vunpack.c.l.b16 %v70
    %v119 = vunpack.c.l.b16 %v71
    %v120 = vunpack.c.l.b16 %v72
    %v121 = vpack.c.b16 %v106, %v105
    %v122 = vpack.c.b16 %v108, %v107
    %v123 = vpack.c.b16 %v110, %v109
    %v124 = vpack.c.b16 %v112, %v111
    %v125 = vpack.c.b16 %v114, %v113
    %v126 = vpack.c.b16 %v116, %v115
    %v127 = vpack.c.b16 %v118, %v117
    %v128 = vpack.c.b16 %v120, %v119
    %137 = vmatpush.bf16.msra.mxu0 %v128
    %138 = vmatpush.bf16.msra.mxu0 %v127
    %139 = vmatpush.bf16.msra.mxu0 %v126
    %140 = vmatpush.bf16.msra.mxu0 %v125
    %141 = vmatpush.bf16.msra.mxu0 %v124
    %142 = vmatpush.bf16.msra.mxu0 %v123
    %143 = vmatpush.bf16.msra.mxu0 %v122
    %144 = vmatpush.bf16.msra.mxu0 %v121
    %145 = vmatmul.bf16.gmra.mxu0 %v85
    %v146 = vpop.f32.mrf.mxu0
    %v147 = vadd.f32 %v75, %v146
    %v148 = vpop.f32.mrf.mxu0
    %v149 = vadd.f32 %v75, %v148
    %150 = vmatmul.bf16.gmra.mxu0 %v86
    %v151 = vpop.f32.mrf.mxu0
    %v152 = vadd.f32 %v75, %v151
    %v153 = vpop.f32.mrf.mxu0
    %v154 = vadd.f32 %v75, %v153
    %155 = vdwg.mxu0
    %v156 = vxor.u32 %v147, 2147483648
    %v157 = vxor.u32 %v149, 2147483648
    %v158 = vxor.u32 %v152, 2147483648
    %v159 = vxor.u32 %v154, 2147483648
    %v160 = vmul.f32 %v156, 1.442695
    %v161 = vpow.pop %v160
    %v162 = vmul.f32 %v157, 1.442695
    %v163 = vpow.pop %v162
    %v164 = vmul.f32 %v158, 1.442695
    %v165 = vpow.pop %v164
    %v166 = vmul.f32 %v159, 1.442695
    %v167 = vpow.pop %v166
    %v168 = vadd.f32 %v161, 1.0
    %v169 = vadd.f32 %v163, 1.0
    %v170 = vadd.f32 %v165, 1.0
    %v171 = vadd.f32 %v167, 1.0
    %v172 = vrcp.pop %v168
    %v173 = vmul.f32 %v168, %v172
    %v174 = vsub.f32 1.0, %v173
    %v175 = vmul.f32 %v172, %v174
    %v176 = vadd.f32 %v172, %v175
    %vm177 = vweird.f32 %v168
    %vm178 = vweird.f32 %v172
    %vm179 = vmor %vm177, %vm178
    %v180 = vsel %vm179, %v172, %v176
    %v181 = vand.u32 2147483647, %v168
    %vm182 = vcmp.eq.f32.partialorder %v181, 8.507059e+37
    %v183 = vand.u32 %v168, 2147483648
    %v184 = vor.u32 1.1754944e-38, %v183
    %v185 = vsel %vm182, %v184, %v180
    %v186 = vmul.f32 1.0, %v185
    %v187 = vrcp.pop %v169
    %v188 = vmul.f32 %v169, %v187
    %v189 = vsub.f32 1.0, %v188
    %v190 = vmul.f32 %v187, %v189
    %v191 = vadd.f32 %v187, %v190
    %vm192 = vweird.f32 %v169
    %vm193 = vweird.f32 %v187
    %vm194 = vmor %vm192, %vm193
    %v195 = vsel %vm194, %v187, %v191
    %v196 = vand.u32 2147483647, %v169
    %vm197 = vcmp.eq.f32.partialorder %v196, 8.507059e+37
    %v198 = vand.u32 %v169, 2147483648
    %v199 = vor.u32 1.1754944e-38, %v198
    %v200 = vsel %vm197, %v199, %v195
    %v201 = vmul.f32 1.0, %v200
    %v202 = vrcp.pop %v170
    %v203 = vmul.f32 %v170, %v202
    %v204 = vsub.f32 1.0, %v203
    %v205 = vmul.f32 %v202, %v204
    %v206 = vadd.f32 %v202, %v205
    %vm207 = vweird.f32 %v170
    %vm208 = vweird.f32 %v202
    %vm209 = vmor %vm207, %vm208
    %v210 = vsel %vm209, %v202, %v206
    %v211 = vand.u32 2147483647, %v170
    %vm212 = vcmp.eq.f32.partialorder %v211, 8.507059e+37
    %v213 = vand.u32 %v170, 2147483648
    %v214 = vor.u32 1.1754944e-38, %v213
    %v215 = vsel %vm212, %v214, %v210
    %v216 = vmul.f32 1.0, %v215
    %v217 = vrcp.pop %v171
    %v218 = vmul.f32 %v171, %v217
    %v219 = vsub.f32 1.0, %v218
    %v220 = vmul.f32 %v217, %v219
    %v221 = vadd.f32 %v217, %v220
    %vm222 = vweird.f32 %v171
    %vm223 = vweird.f32 %v217
    %vm224 = vmor %vm222, %vm223
    %v225 = vsel %vm224, %v217, %v221
    %v226 = vand.u32 2147483647, %v171
    %vm227 = vcmp.eq.f32.partialorder %v226, 8.507059e+37
    %v228 = vand.u32 %v171, 2147483648
    %v229 = vor.u32 1.1754944e-38, %v228
    %v230 = vsel %vm227, %v229, %v225
    %v231 = vmul.f32 1.0, %v230
    %v232 = vpack.c.bf16 %v186, %v186
    %v233 = vpack.c.bf16 %v201, %v201
    %v234 = vpack.c.bf16 %v216, %v216
    %v235 = vpack.c.bf16 %v231, %v231
    %v236 = vld [vmem:[#allocation2] sm:$0xff]
    %v237 = vld [vmem:[#allocation2 + $0x8] sm:$0xf]
    %v238 = vld [vmem:[#allocation2 + $0xc] sm:$0xff]
    %v239 = vld [vmem:[#allocation2 + $0x14] sm:$0xf]
    %v240 = vld [vmem:[#allocation2 + $0x18] sm:$0xff]
    %v241 = vld [vmem:[#allocation2 + $0x20] sm:$0xf]
    %v242 = vld [vmem:[#allocation2 + $0x24] sm:$0xff]
    %v243 = vld [vmem:[#allocation2 + $0x2c] sm:$0xf]
    %v244 = vld [vmem:[#allocation2 + $0x30] sm:$0xff]
    %v245 = vld [vmem:[#allocation2 + $0x38] sm:$0xf]
    %v246 = vld [vmem:[#allocation2 + $0x3c] sm:$0xff]
    %v247 = vld [vmem:[#allocation2 + $0x44] sm:$0xf]
    %v248 = vld [vmem:[#allocation2 + $0x48] sm:$0xff]
    %v249 = vld [vmem:[#allocation2 + $0x50] sm:$0xf]
    %v250 = vld [vmem:[#allocation2 + $0x54] sm:$0xff]
    %v251 = vld [vmem:[#allocation2 + $0x5c] sm:$0xf]
    %v252 = vld [vmem:[#allocation2 + $0x60] sm:$0xff]
    %v253 = vld [vmem:[#allocation2 + $0x68] sm:$0xf]
    %v254 = vld [vmem:[#allocation2 + $0x6c] sm:$0xff]
    %v255 = vld [vmem:[#allocation2 + $0x74] sm:$0xf]
    %v256 = vld [vmem:[#allocation2 + $0x78] sm:$0xff]
    %v257 = vld [vmem:[#allocation2 + $0x80] sm:$0xf]
    %v258 = vld [vmem:[#allocation2 + $0x84] sm:$0xff]
    %v259 = vld [vmem:[#allocation2 + $0x8c] sm:$0xf]
    %v260 = vld [vmem:[#allocation2 + $0x90] sm:$0xff]
    %v261 = vld [vmem:[#allocation2 + $0x98] sm:$0xf]
    %v262 = vld [vmem:[#allocation2 + $0x9c] sm:$0xff]
    %v263 = vld [vmem:[#allocation2 + $0xa4] sm:$0xf]
    %v264 = vld [vmem:[#allocation2 + $0xa8] sm:$0xff]
    %v265 = vld [vmem:[#allocation2 + $0xb0] sm:$0xf]
    %v266 = vld [vmem:[#allocation2 + $0xb4] sm:$0xff]
    %v267 = vld [vmem:[#allocation2 + $0xbc] sm:$0xf]
    %v268 = vld [vmem:[%s5] sm:$0x7]
    %v270 = vperm.slane %v268, 0
    %v271 = vperm.slane %v268, 1
    %v272 = vperm.slane %v268, 2
    %v308 = vunpack.c.l.b16 %v236
    %v309 = vunpack.c.h.b16 %v236
    %v310 = vunpack.c.l.b16 %v237
    %v311 = vunpack.c.l.b16 %v238
    %v312 = vunpack.c.h.b16 %v238
    %v313 = vunpack.c.l.b16 %v239
    %v314 = vunpack.c.l.b16 %v240
    %v315 = vunpack.c.h.b16 %v240
    %v316 = vunpack.c.l.b16 %v241
    %v317 = vunpack.c.l.b16 %v242
    %v318 = vunpack.c.h.b16 %v242
    %v319 = vunpack.c.l.b16 %v243
    %v320 = vunpack.c.l.b16 %v244
    %v321 = vunpack.c.h.b16 %v244
    %v322 = vunpack.c.l.b16 %v245
    %v323 = vunpack.c.l.b16 %v246
    %v324 = vunpack.c.h.b16 %v246
    %v325 = vunpack.c.l.b16 %v247
    %v326 = vunpack.c.l.b16 %v248
    %v327 = vunpack.c.h.b16 %v248
    %v328 = vunpack.c.l.b16 %v249
    %v329 = vunpack.c.l.b16 %v250
    %v330 = vunpack.c.h.b16 %v250
    %v331 = vunpack.c.l.b16 %v251
    %v332 = vunpack.c.l.b16 %v252
    %v333 = vunpack.c.h.b16 %v252
    %v334 = vunpack.c.l.b16 %v253
    %v335 = vunpack.c.l.b16 %v254
    %v336 = vunpack.c.h.b16 %v254
    %v337 = vunpack.c.l.b16 %v255
    %v338 = vunpack.c.l.b16 %v256
    %v339 = vunpack.c.h.b16 %v256
    %v340 = vunpack.c.l.b16 %v257
    %v341 = vunpack.c.l.b16 %v258
    %v342 = vunpack.c.h.b16 %v258
    %v343 = vunpack.c.l.b16 %v259
    %v344 = vunpack.c.l.b16 %v260
    %v345 = vunpack.c.h.b16 %v260
    %v346 = vunpack.c.l.b16 %v261
    %v347 = vunpack.c.l.b16 %v262
    %v348 = vunpack.c.h.b16 %v262
    %v349 = vunpack.c.l.b16 %v263
    %v350 = vunpack.c.l.b16 %v264
    %v351 = vunpack.c.h.b16 %v264
    %v352 = vunpack.c.l.b16 %v265
    %v353 = vunpack.c.l.b16 %v266
    %v354 = vunpack.c.h.b16 %v266
    %v355 = vunpack.c.l.b16 %v267
    %v356 = vpack.c.b16 %v311, %v308
    %v357 = vpack.c.b16 %v312, %v309
    %v358 = vpack.c.b16 %v313, %v310
    %v359 = vpack.c.b16 %v317, %v314
    %v360 = vpack.c.b16 %v318, %v315
    %v361 = vpack.c.b16 %v319, %v316
    %v362 = vpack.c.b16 %v323, %v320
    %v363 = vpack.c.b16 %v324, %v321
    %v364 = vpack.c.b16 %v325, %v322
    %v365 = vpack.c.b16 %v329, %v326
    %v366 = vpack.c.b16 %v330, %v327
    %v367 = vpack.c.b16 %v331, %v328
    %v368 = vpack.c.b16 %v335, %v332
    %v369 = vpack.c.b16 %v336, %v333
    %v370 = vpack.c.b16 %v337, %v334
    %v371 = vpack.c.b16 %v341, %v338
    %v372 = vpack.c.b16 %v342, %v339
    %v373 = vpack.c.b16 %v343, %v340
    %v374 = vpack.c.b16 %v347, %v344
    %v375 = vpack.c.b16 %v348, %v345
    %v376 = vpack.c.b16 %v349, %v346
    %v377 = vpack.c.b16 %v353, %v350
    %v378 = vpack.c.b16 %v354, %v351
    %v379 = vpack.c.b16 %v355, %v352
    %404 = vmatpush.bf16.msra.mxu0 %v377
    %405 = vmatpush.bf16.msra.mxu0 %v374
    %406 = vmatpush.bf16.msra.mxu0 %v371
    %407 = vmatpush.bf16.msra.mxu0 %v368
    %408 = vmatpush.bf16.msra.mxu0 %v365
    %409 = vmatpush.bf16.msra.mxu0 %v362
    %410 = vmatpush.bf16.msra.mxu0 %v359
    %411 = vmatpush.bf16.msra.mxu0 %v356
    %412 = vmatmul.bf16.gmra.mxu0 %v85
    %v413 = vpop.f32.mrf.mxu0
    %v414 = vadd.f32 %v270, %v413
    %v415 = vpop.f32.mrf.mxu0
    %v416 = vadd.f32 %v270, %v415
    %417 = vmatmul.bf16.gmra.mxu0 %v86
    %v418 = vpop.f32.mrf.mxu0
    %v419 = vadd.f32 %v270, %v418
    %v420 = vpop.f32.mrf.mxu0
    %v421 = vadd.f32 %v270, %v420
    %422 = vdwg.mxu0
    %423 = vmatpush.bf16.msra.mxu0 %v378
    %424 = vmatpush.bf16.msra.mxu0 %v375
    %425 = vmatpush.bf16.msra.mxu0 %v372
    %426 = vmatpush.bf16.msra.mxu0 %v369
    %427 = vmatpush.bf16.msra.mxu0 %v366
    %428 = vmatpush.bf16.msra.mxu0 %v363
    %429 = vmatpush.bf16.msra.mxu0 %v360
    %430 = vmatpush.bf16.msra.mxu0 %v357
    %431 = vmatmul.bf16.gmra.mxu0 %v85
    %v432 = vpop.f32.mrf.mxu0
    %v433 = vadd.f32 %v271, %v432
    %v434 = vpop.f32.mrf.mxu0
    %v435 = vadd.f32 %v271, %v434
    %436 = vmatmul.bf16.gmra.mxu0 %v86
    %v437 = vpop.f32.mrf.mxu0
    %v438 = vadd.f32 %v271, %v437
    %v439 = vpop.f32.mrf.mxu0
    %v440 = vadd.f32 %v271, %v439
    %441 = vdwg.mxu0
    %442 = vmatpush.bf16.msra.mxu0 %v379
    %443 = vmatpush.bf16.msra.mxu0 %v376
    %444 = vmatpush.bf16.msra.mxu0 %v373
    %445 = vmatpush.bf16.msra.mxu0 %v370
    %446 = vmatpush.bf16.msra.mxu0 %v367
    %447 = vmatpush.bf16.msra.mxu0 %v364
    %448 = vmatpush.bf16.msra.mxu0 %v361
    %449 = vmatpush.bf16.msra.mxu0 %v358
    %450 = vmatmul.bf16.gmra.mxu0 %v85
    %v451 = vpop.f32.mrf.mxu0
    %v452 = vadd.f32 %v272, %v451
    %v453 = vpop.f32.mrf.mxu0
    %v454 = vadd.f32 %v272, %v453
    %455 = vmatmul.bf16.gmra.mxu0 %v86
    %v456 = vpop.f32.mrf.mxu0
    %v457 = vadd.f32 %v272, %v456
    %v458 = vpop.f32.mrf.mxu0
    %v459 = vadd.f32 %v272, %v458
    %460 = vdwg.mxu0
    %v461 = vpack.c.bf16 %v433, %v414
    %v462 = vpack.c.bf16 %v452, %v452
    %v463 = vpack.c.bf16 %v435, %v416
    %v464 = vpack.c.bf16 %v454, %v454
    %v465 = vpack.c.bf16 %v438, %v419
    %v466 = vpack.c.bf16 %v457, %v457
    %v467 = vpack.c.bf16 %v440, %v421
    %v468 = vpack.c.bf16 %v459, %v459
    %470 = vset.pattern.permute.xlu0 0
    %471 = vperm.xlu0 %470, %v232
    %v472 = vpop.permute.xlu0 %471
    %v475 = vunpack.c.l.s4 839922192
    %v476 = vunpack.c.0.s8 %v475
    %v477 = vperm.slane %v472, %v476
    %479 = vset.pattern.permute.xlu0 0
    %480 = vperm.xlu0 %479, %v233
    %v481 = vpop.permute.xlu0 %480
    %v484 = vunpack.c.l.s4 839922192
    %v485 = vunpack.c.0.s8 %v484
    %v486 = vperm.slane %v481, %v485
    %v487 = vunpack.c.l.bf16 %v45
    %v488 = vunpack.c.l.bf16 %v46
    %v489 = vunpack.c.l.bf16 %v477
    %v490 = vunpack.c.l.bf16 %v486
    %v491 = vmul.f32 %v487, %v489
    %v492 = vmul.f32 %v488, %v490
    %v493 = vpack.c.bf16 %v492, %v491
    %494 = vset.pattern.permute.xlu0 1
    %495 = vperm.xlu0 %494, %v232
    %v496 = vpop.permute.xlu0 %495
    %v499 = vunpack.c.l.s4 839922192
    %v500 = vunpack.c.0.s8 %v499
    %v501 = vperm.slane %v496, %v500
    %502 = vset.pattern.permute.xlu0 1
    %503 = vperm.xlu0 %502, %v233
    %v504 = vpop.permute.xlu0 %503
    %v507 = vunpack.c.l.s4 839922192
    %v508 = vunpack.c.0.s8 %v507
    %v509 = vperm.slane %v504, %v508
    %v510 = vunpack.c.l.bf16 %v47
    %v511 = vunpack.c.l.bf16 %v48
    %v512 = vunpack.c.l.bf16 %v501
    %v513 = vunpack.c.l.bf16 %v509
    %v514 = vmul.f32 %v510, %v512
    %v515 = vmul.f32 %v511, %v513
    %v516 = vpack.c.bf16 %v515, %v514
    %v519 = vunpack.c.h.b16 %v461
    %v520 = vunpack.c.h.b16 %v463
    %v521 = vpack.c.b16 %v520, %v519
    %vm523 = vcmask 130048
    %v525 = vsel %vm523, %v516, 0
    %527 = vmatpush.bf16.msra.mxu0 0
    %528 = vmatpush.bf16.msra.mxu0 0
    %529 = vmatpush.bf16.msra.mxu0 0
    %530 = vmatpush.bf16.msra.mxu0 0
    %531 = vmatpush.bf16.msra.mxu0 0
    %532 = vmatpush.bf16.msra.mxu0 0
    %533 = vmatpush.bf16.msra.mxu0 0
    %534 = vmatpush.bf16.msra.mxu0 %v521
    %535 = vmatmul.bf16.gmra.mxu0 %v525
    %v536 = vpop.f32.mrf.mxu0
    %v537 = vadd.f32 0.0, %v536
    %v538 = vpop.f32.mrf.mxu0
    %v539 = vadd.f32 0.0, %v538
    %540 = vdwg.mxu0
    %v541 = vunpack.c.l.b16 %v461
    %v542 = vunpack.c.l.b16 %v463
    %v543 = vpack.c.b16 %v542, %v541
    %v546 = vsel %vm523, %v493, 0
    %548 = vmatpush.bf16.msra.mxu0 0
    %549 = vmatpush.bf16.msra.mxu0 0
    %550 = vmatpush.bf16.msra.mxu0 0
    %551 = vmatpush.bf16.msra.mxu0 0
    %552 = vmatpush.bf16.msra.mxu0 0
    %553 = vmatpush.bf16.msra.mxu0 0
    %554 = vmatpush.bf16.msra.mxu0 0
    %555 = vmatpush.bf16.msra.mxu0 %v543
    %556 = vmatmul.bf16.gmra.mxu0 %v546
    %v557 = vpop.f32.mrf.mxu0
    %v558 = vadd.f32 %v537, %v557
    %v559 = vpop.f32.mrf.mxu0
    %v560 = vadd.f32 %v539, %v559
    %561 = vdwg.mxu0
    %562 = vset.pattern.permute.xlu0 2
    %563 = vperm.xlu0 %562, %v232
    %v564 = vpop.permute.xlu0 %563
    %v567 = vunpack.c.l.s4 839922192
    %v568 = vunpack.c.0.s8 %v567
    %v569 = vperm.slane %v564, %v568
    %570 = vset.pattern.permute.xlu0 2
    %571 = vperm.xlu0 %570, %v233
    %v572 = vpop.permute.xlu0 %571
    %v575 = vunpack.c.l.s4 839922192
    %v576 = vunpack.c.0.s8 %v575
    %v577 = vperm.slane %v572, %v576
    %v578 = vunpack.c.l.bf16 %v49
    %v579 = vunpack.c.l.bf16 %v50
    %v580 = vunpack.c.l.bf16 %v569
    %v581 = vunpack.c.l.bf16 %v577
    %v582 = vmul.f32 %v578, %v580
    %v583 = vmul.f32 %v579, %v581
    %v584 = vpack.c.bf16 %v583, %v582
    %v587 = vunpack.c.l.b16 %v462
    %v588 = vunpack.c.l.b16 %v464
    %v589 = vpack.c.b16 %v588, %v587
    %v592 = vsel %vm523, %v584, 0
    %594 = vmatpush.bf16.msra.mxu0 0
    %595 = vmatpush.bf16.msra.mxu0 0
    %596 = vmatpush.bf16.msra.mxu0 0
    %597 = vmatpush.bf16.msra.mxu0 0
    %598 = vmatpush.bf16.msra.mxu0 0
    %599 = vmatpush.bf16.msra.mxu0 0
    %600 = vmatpush.bf16.msra.mxu0 0
    %601 = vmatpush.bf16.msra.mxu0 %v589
    %602 = vmatmul.bf16.gmra.mxu0 %v592
    %v603 = vpop.f32.mrf.mxu0
    %v604 = vadd.f32 0.0, %v603
    %v605 = vpop.f32.mrf.mxu0
    %v606 = vadd.f32 0.0, %v605
    %607 = vdwg.mxu0
    %v608 = vadd.f32 %v558, %v604
    %v609 = vadd.f32 %v560, %v606
    %v610 = vmax.f32 %v608, 0.0
    %v611 = vmax.f32 %v609, 0.0
    %612 = vst [vmem:[#allocation5] sm:$0xff] %v610
    %613 = vst [vmem:[#allocation5 + $0x8] sm:$0xff] %v611
    %615 = vset.pattern.permute.xlu0 0
    %616 = vperm.xlu0 %615, %v234
    %v617 = vpop.permute.xlu0 %616
    %v620 = vunpack.c.l.s4 839922192
    %v621 = vunpack.c.0.s8 %v620
    %v622 = vperm.slane %v617, %v621
    %624 = vset.pattern.permute.xlu0 0
    %625 = vperm.xlu0 %624, %v235
    %v626 = vpop.permute.xlu0 %625
    %v629 = vunpack.c.l.s4 839922192
    %v630 = vunpack.c.0.s8 %v629
    %v631 = vperm.slane %v626, %v630
    %v632 = vunpack.c.l.bf16 %v51
    %v633 = vunpack.c.l.bf16 %v52
    %v634 = vunpack.c.l.bf16 %v622
    %v635 = vunpack.c.l.bf16 %v631
    %v636 = vmul.f32 %v632, %v634
    %v637 = vmul.f32 %v633, %v635
    %v638 = vpack.c.bf16 %v637, %v636
    %639 = vset.pattern.permute.xlu0 1
    %640 = vperm.xlu0 %639, %v234
    %v641 = vpop.permute.xlu0 %640
    %v644 = vunpack.c.l.s4 839922192
    %v645 = vunpack.c.0.s8 %v644
    %v646 = vperm.slane %v641, %v645
    %647 = vset.pattern.permute.xlu0 1
    %648 = vperm.xlu0 %647, %v235
    %v649 = vpop.permute.xlu0 %648
    %v652 = vunpack.c.l.s4 839922192
    %v653 = vunpack.c.0.s8 %v652
    %v654 = vperm.slane %v649, %v653
    %v655 = vunpack.c.l.bf16 %v53
    %v656 = vunpack.c.l.bf16 %v54
    %v657 = vunpack.c.l.bf16 %v646
    %v658 = vunpack.c.l.bf16 %v654
    %v659 = vmul.f32 %v655, %v657
    %v660 = vmul.f32 %v656, %v658
    %v661 = vpack.c.bf16 %v660, %v659
    %v664 = vunpack.c.h.b16 %v465
    %v665 = vunpack.c.h.b16 %v467
    %v666 = vpack.c.b16 %v665, %v664
    %v669 = vsel %vm523, %v661, 0
    %671 = vmatpush.bf16.msra.mxu0 0
    %672 = vmatpush.bf16.msra.mxu0 0
    %673 = vmatpush.bf16.msra.mxu0 0
    %674 = vmatpush.bf16.msra.mxu0 0
    %675 = vmatpush.bf16.msra.mxu0 0
    %676 = vmatpush.bf16.msra.mxu0 0
    %677 = vmatpush.bf16.msra.mxu0 0
    %678 = vmatpush.bf16.msra.mxu0 %v666
    %679 = vmatmul.bf16.gmra.mxu0 %v669
    %v680 = vpop.f32.mrf.mxu0
    %v681 = vadd.f32 0.0, %v680
    %v682 = vpop.f32.mrf.mxu0
    %v683 = vadd.f32 0.0, %v682
    %684 = vdwg.mxu0
    %v685 = vunpack.c.l.b16 %v465
    %v686 = vunpack.c.l.b16 %v467
    %v687 = vpack.c.b16 %v686, %v685
    %v690 = vsel %vm523, %v638, 0
    %692 = vmatpush.bf16.msra.mxu0 0
    %693 = vmatpush.bf16.msra.mxu0 0
    %694 = vmatpush.bf16.msra.mxu0 0
    %695 = vmatpush.bf16.msra.mxu0 0
    %696 = vmatpush.bf16.msra.mxu0 0
    %697 = vmatpush.bf16.msra.mxu0 0
    %698 = vmatpush.bf16.msra.mxu0 0
    %699 = vmatpush.bf16.msra.mxu0 %v687
    %700 = vmatmul.bf16.gmra.mxu0 %v690
    %v701 = vpop.f32.mrf.mxu0
    %v702 = vadd.f32 %v681, %v701
    %v703 = vpop.f32.mrf.mxu0
    %v704 = vadd.f32 %v683, %v703
    %705 = vdwg.mxu0
    %706 = vset.pattern.permute.xlu0 2
    %707 = vperm.xlu0 %706, %v234
    %v708 = vpop.permute.xlu0 %707
    %v711 = vunpack.c.l.s4 839922192
    %v712 = vunpack.c.0.s8 %v711
    %v713 = vperm.slane %v708, %v712
    %714 = vset.pattern.permute.xlu0 2
    %715 = vperm.xlu0 %714, %v235
    %v716 = vpop.permute.xlu0 %715
    %v719 = vunpack.c.l.s4 839922192
    %v720 = vunpack.c.0.s8 %v719
    %v721 = vperm.slane %v716, %v720
    %v722 = vunpack.c.l.bf16 %v55
    %v723 = vunpack.c.l.bf16 %v56
    %v724 = vunpack.c.l.bf16 %v713
    %v725 = vunpack.c.l.bf16 %v721
    %v726 = vmul.f32 %v722, %v724
    %v727 = vmul.f32 %v723, %v725
    %v728 = vpack.c.bf16 %v727, %v726
    %v731 = vunpack.c.l.b16 %v466
    %v732 = vunpack.c.l.b16 %v468
    %v733 = vpack.c.b16 %v732, %v731
    %v736 = vsel %vm523, %v728, 0
    %738 = vmatpush.bf16.msra.mxu0 0
    %739 = vmatpush.bf16.msra.mxu0 0
    %740 = vmatpush.bf16.msra.mxu0 0
    %741 = vmatpush.bf16.msra.mxu0 0
    %742 = vmatpush.bf16.msra.mxu0 0
    %743 = vmatpush.bf16.msra.mxu0 0
    %744 = vmatpush.bf16.msra.mxu0 0
    %745 = vmatpush.bf16.msra.mxu0 %v733
    %746 = vmatmul.bf16.gmra.mxu0 %v736
    %v747 = vpop.f32.mrf.mxu0
    %v748 = vadd.f32 0.0, %v747
    %v749 = vpop.f32.mrf.mxu0
    %v750 = vadd.f32 0.0, %v749
    %751 = vdwg.mxu0
    %v752 = vadd.f32 %v702, %v748
    %v753 = vadd.f32 %v704, %v750
    %v754 = vmax.f32 %v752, 0.0
    %v755 = vmax.f32 %v753, 0.0
    %756 = vst [vmem:[#allocation5 + $0x10] sm:$0xff] %v754
    %757 = vst [vmem:[#allocation5 + $0x18] sm:$0xff] %v755
    // Predicated region
    $region30: #{tpu_custom_call.1} parent=1 // pred_check
      _
    $region31: #{tpu_custom_call.1} parent=1 // pred_check_branch
      %759 = sbr.rel (0) target = $region33
    $region32: #{tpu_custom_call.1} parent=1 // pred_region
      %761 = vsyncadd [#allocation4], 0
      %s762 = sshll.u32 [#allocation5], 4
      %s763 = int_to_ptr.vmem [resolvable:$true] %s762
      %s764 = sshll.u32 %s6, 4
      %s765 = int_to_ptr.hbm [resolvable:$true] %s764
      %770 = dma.vmem_to_hbm [thread:$0]  %s763, 512, %s765, [#allocation4], 128, 128, 8
    $region33: #{tpu_custom_call.1} parent=1 // pred_fallthru
      _
    // Predicated region
    $region34: #{tpu_custom_call.1} parent=1 // pred_check
      _
    $region35: #{tpu_custom_call.1} parent=1 // pred_check_branch
      %772 = sbr.rel (0) target = $region37
    $region36: #{tpu_custom_call.1} parent=1 // pred_region
      %774 = dma.done [#allocation4], 512
    $region37: #{tpu_custom_call.1} parent=1 // pred_fallthru
      _
    %775 = vsyncpa [#allocation3], 1
    %776 = vsyncpa [#allocation4], 1

</llo_original>
